<compile_context>
chip_gen: v7x
topology: tpu7x:2x2x1
jax: 0.10.0
libtpu: 0.0.40
codegen_flags: <defaults>
</compile_context>

<pallas_src>
import functools

import jax
import jax.numpy as jnp
from jax.experimental import pallas as pl
from jax.experimental.pallas import tpu as pltpu

_EPS = 1e-6
_SQRT1_2 = 0.7071067811865476


# ------------------------------------------------------------------------------------
# In-kernel math helpers (pure jnp on values / refs; all lower to Mosaic)
# ------------------------------------------------------------------------------------
def _erf_poly(x):
    # Abramowitz & Stegun 7.1.26 (max abs error ~1.5e-7) — erf via exp + elementwise.
    p = 0.3275911
    a1, a2, a3, a4, a5 = (0.254829592, -0.284496736, 1.421413741,
                          -1.453152027, 1.061405429)
    ax = jnp.abs(x)
    t = 1.0 / (1.0 + p * ax)
    poly = ((((a5 * t + a4) * t + a3) * t + a2) * t + a1) * t
    y = 1.0 - poly * jnp.exp(-ax * ax)
    return jnp.where(x < 0, -y, y)


def _gelu(x):
    # exact (erf-based) GELU, matching torch.nn.GELU() default
    return 0.5 * x * (1.0 + _erf_poly(x * _SQRT1_2))


def _pointwise(w, x):
    """1x1 conv: w (Cout, Cin) value, x (Cin, HW) value -> (Cout, HW) f32.

    Small channel counts stay on the VPU (cheap, avoids an under-filled MXU);
    larger ones use an MXU matmul (review: gate the MXU path on size)."""
    cin = x.shape[0]
    if cin >= 64:
        return jnp.dot(w, x, preferred_element_type=jnp.float32)
    acc = None
    for ci in range(cin):
        term = w[:, ci:ci + 1] * x[ci:ci + 1, :]
        acc = term if acc is None else acc + term
    return acc


def _dwconv3x3_flat(x, tap_ref, ch0, tap0, masks, W, numpy_roll):
    """Depthwise 3x3 (padding=1) on a lane-flattened (nch, H*W) tile.

    Shifted taps come from pltpu.roll along the lane axis (XLU slot, no padded
    tensor materialization); out-of-image positions are zeroed with the
    precomputed border masks.  Weights/bias rows are the *global* channel
    indices ch0..ch0+nch-1 of the consolidated tap block."""
    nch, HW = x.shape
    acc = None
    for dh in (-1, 0, 1):
        for dwp in (-1, 0, 1):
            k = (dh + 1) * 3 + (dwp + 1)
            s = dh * W + dwp                      # flat-index offset of this tap
            if s == 0:
                shifted = x
            else:
                amt = (-s) % HW if numpy_roll else s % HW
                shifted = pltpu.roll(x, amt, axis=1) * masks[k:k + 1, :]
            term = tap_ref[ch0:ch0 + nch, tap0 + k:tap0 + k + 1] * shifted
            acc = term if acc is None else acc + term
    return acc


# ------------------------------------------------------------------------------------
# The Pallas kernel (one batch element per grid step, lane-dense layout)
# ------------------------------------------------------------------------------------
def _ghpa_kernel(x_ref, att_ref, mask_ref, vec_ref, tap_ref, pw1_ref, pw2_ref,
                 o_ref, *, W, c3, numpy_roll):
    # x_ref   : (1, dim_in, HW)   att_ref : (3C, HW)    mask_ref: (9, HW)
    # vec_ref : (D, 8)            tap_ref : (D, 18)
    # pw1_ref : (C, C)            pw2_ref : (dim_out, dim_in)
    x = x_ref[0]                                   # (dim_in, HW) lane-dense tile
    dim_in = x.shape[0]
    c = dim_in - c3
    dim_out = o_ref.shape[1]
    inv_n = 1.0 / dim_in
    masks = mask_ref[...]                          # (9, HW)

    # ---- norm1: channels_first LayerNorm over the (sublane) channel axis ----
    mean1 = jnp.sum(x, axis=0, keepdims=True) * inv_n
    d1 = x - mean1
    var1 = jnp.sum(d1 * d1, axis=0, keepdims=True) * inv_n
    rstd1 = jax.lax.rsqrt(var1 + _EPS)
    xn = vec_ref[:dim_in, 0:1] * (d1 * rstd1) + vec_ref[:dim_in, 1:2]

    xa = xn[:c3]                                   # residual piece a (3C, HW)
    xb = xn[c3:]                                   # residual piece b (C, HW)

    # ---- x1/x2/x3 branches: Hadamard product with precomputed attention maps ----
    ya = xa * att_ref[...]

    # ---- x4 branch: 1x1 -> GELU -> depthwise 3x3 ----
    t = _pointwise(pw1_ref[...], xb) + vec_ref[:c, 4:5]       # dw_pw bias
    t = _gelu(t)
    yb = _dwconv3x3_flat(t, tap_ref, 0, 0, masks, W, numpy_roll) \
        + vec_ref[:c, 5:6]                                    # dw_dw bias

    # ---- norm2 computed piecewise (no concatenate), then residual ----
    mean2 = (jnp.sum(ya, axis=0, keepdims=True)
             + jnp.sum(yb, axis=0, keepdims=True)) * inv_n
    da = ya - mean2
    db = yb - mean2
    var2 = (jnp.sum(da * da, axis=0, keepdims=True)
            + jnp.sum(db * db, axis=0, keepdims=True)) * inv_n
    rstd2 = jax.lax.rsqrt(var2 + _EPS)
    za = vec_ref[:c3, 2:3] * (da * rstd2) + vec_ref[:c3, 3:4] + xa
    zb = vec_ref[c3:dim_in, 2:3] * (db * rstd2) + vec_ref[c3:dim_in, 3:4] + xb

    # ---- ldw: depthwise 3x3 -> GELU -> 1x1, split over the two channel pieces.
    #      depthwise + GELU are per-channel and the 1x1 splits as a sum over
    #      channel blocks, so the concat of the reference is never materialized.
    ga = _gelu(_dwconv3x3_flat(za, tap_ref, 0, 9, masks, W, numpy_roll)
               + vec_ref[:c3, 6:7])
    gb = _gelu(_dwconv3x3_flat(zb, tap_ref, c3, 9, masks, W, numpy_roll)
               + vec_ref[c3:dim_in, 6:7])
    out = (_pointwise(pw2_ref[:, :c3], ga)
           + _pointwise(pw2_ref[:, c3:dim_in], gb)
           + vec_ref[:dim_out, 7:8])
    o_ref[0] = out


# ------------------------------------------------------------------------------------
# One-time calibration of pltpu.roll's shift direction (guards against convention
# differences across JAX versions).  Runs a tiny pallas_call once; call outside jit.
# ------------------------------------------------------------------------------------
_NUMPY_ROLL = None


def _roll_like_numpy():
    global _NUMPY_ROLL
    if _NUMPY_ROLL is None:
        def k(x_ref, o_ref):
            o_ref[...] = pltpu.roll(x_ref[...], 3, axis=1)
        x = jnp.tile(jnp.arange(256, dtype=jnp.float32)[None, :], (8, 1))
        y = pl.pallas_call(
            k, out_shape=jax.ShapeDtypeStruct((8, 256), jnp.float32))(x)
        _NUMPY_ROLL = bool(jnp.array_equal(y, jnp.roll(x, 3, axis=1)))
    return _NUMPY_ROLL


# ------------------------------------------------------------------------------------
# Pallas wrapper: layout plumbing + constant consolidation (all lane/sublane-dense)
# ------------------------------------------------------------------------------------
def ghpa_pallas(x, p, a_xy, a_zx, a_zy):
    f32 = jnp.float32
    B, dim_in, H, W = x.shape
    HW = H * W
    C = dim_in // 4
    C3 = 3 * C
    dim_out = p['ldw_pw_w'].shape[0]
    D = max(dim_in, dim_out)

    # lane-dense attention multiplier for the first three chunks: (3C, HW)
    # (parameter-only work; DMA'd once per call since its block index is constant)
    att = jnp.concatenate([
        a_xy.reshape(C, HW),
        jnp.broadcast_to(a_zx[:, :, None], (C, H, W)).reshape(C, HW),
        jnp.broadcast_to(a_zy[:, None, :], (C, H, W)).reshape(C, HW),
    ], axis=0).astype(f32)

    # border-validity masks for the 9 taps of a 3x3 depthwise conv, flattened (9, HW)
    hh = jnp.arange(H)[:, None]
    ww = jnp.arange(W)[None, :]
    m = []
    for dh in (-1, 0, 1):
        for dwp in (-1, 0, 1):
            m.append(((hh + dh >= 0) & (hh + dh < H) &
                      (ww + dwp >= 0) & (ww + dwp < W)).reshape(HW))
    masks = jnp.stack(m, axis=0).astype(f32)

    # consolidated per-channel scale/bias vectors: one (D, 8) block,
    # channels on sublanes, one column per vector (zero-padded rows)
    def col(v, n):
        return jnp.pad(v.astype(f32), (0, D - n))
    vecs = jnp.stack([
        col(p['n1_w'], dim_in), col(p['n1_b'], dim_in),
        col(p['n2_w'], dim_in), col(p['n2_b'], dim_in),
        col(p['dw_pw_b'], C), col(p['dw_dw_b'], C),
        col(p['ldw_dw_b'], dim_in), col(p['ldw_pw_b'], dim_out),
    ], axis=1)                                                    # (D, 8)

    # consolidated depthwise 3x3 taps: (D, 18); cols 0..8 = dw branch, 9..17 = ldw
    def taps9(w, n):
        return jnp.pad(w[:, 0].reshape(n, 9).astype(f32), ((0, D - n), (0, 0)))
    taps = jnp.concatenate([taps9(p['dw_dw_w'], C),
                            taps9(p['ldw_dw_w'], dim_in)], axis=1)

    # pointwise (1x1) conv weights, (Cout, Cin)
    pw1 = p['dw_pw_w'][:, :, 0, 0].astype(f32)                    # (C, C)
    pw2 = p['ldw_pw_w'][:, :, 0, 0].astype(f32)                   # (dim_out, dim_in)

    x_flat = x.reshape(B, dim_in, HW).astype(f32)

    kernel = functools.partial(_ghpa_kernel, W=W, c3=C3,
                               numpy_roll=_roll_like_numpy())

    consts = [att, masks, vecs, taps, pw1, pw2]

    def cspec(a):
        nd = a.ndim
        return pl.BlockSpec(a.shape, lambda b, _nd=nd: (0,) * _nd)

    out = pl.pallas_call(
        kernel,
        out_shape=jax.ShapeDtypeStruct((B, dim_out, HW), f32),
        grid=(B,),
        in_specs=[pl.BlockSpec((1, dim_in, HW), lambda b: (b, 0, 0))]
                 + [cspec(a) for a in consts],
        out_specs=pl.BlockSpec((1, dim_out, HW), lambda b: (b, 0, 0)),
        compiler_params=pltpu.CompilerParams(
            dimension_semantics=("parallel",)),   # v7x: two TCs split the batch
    )(x_flat, *consts)
    return out.reshape(B, dim_out, H, W)


# ------------------------------------------------------------------------------------
# Plain-JAX glue: bilinear (align_corners) resize + tiny parameter-only conv towers
# ------------------------------------------------------------------------------------
def _interp_idx(in_size, out_size):
    if out_size == 1:
        pos = jnp.zeros((1,), jnp.float32)
    else:
        pos = jnp.arange(out_size, dtype=jnp.float32) * ((in_size - 1) / (out_size - 1))
    i0 = jnp.clip(jnp.floor(pos), 0, in_size - 1).astype(jnp.int32)
    i1 = jnp.minimum(i0 + 1, in_size - 1)
    frac = pos - i0.astype(jnp.float32)
    return i0, i1, frac


def bilinear_resize_ac(x, out_h, out_w):
    in_h, in_w = x.shape[-2], x.shape[-1]
    i0, i1, fh = _interp_idx(in_h, out_h)
    rows = x[..., i0, :] * (1.0 - fh)[:, None] + x[..., i1, :] * fh[:, None]
    j0, j1, fw = _interp_idx(in_w, out_w)
    return rows[..., j0] * (1.0 - fw) + rows[..., j1] * fw


_HI = jax.lax.Precision.HIGHEST


def dwconv2d(x, w, b):  # x (N,C,H,W), w (C,1,3,3), b (C,)
    C = x.shape[1]
    out = jax.lax.conv_general_dilated(
        x, w, window_strides=(1, 1), padding=((1, 1), (1, 1)),
        dimension_numbers=('NCHW', 'OIHW', 'NCHW'),
        feature_group_count=C, precision=_HI)
    return out + b[None, :, None, None]


def conv1x1_nchw(x, w, b):  # w (O,I,1,1)
    return jnp.einsum('oi,nihw->nohw', w[:, :, 0, 0], x, precision=_HI) \
        + b[None, :, None, None]


def dwconv1d(x, w, b):  # x (N,C,L), w (C,1,3), b (C,)
    C = x.shape[1]
    out = jax.lax.conv_general_dilated(
        x, w, window_strides=(1,), padding=((1, 1),),
        dimension_numbers=('NCH', 'OIH', 'NCH'),
        feature_group_count=C, precision=_HI)
    return out + b[None, :, None]


def conv1x1_ncl(x, w, b):  # w (O,I,1)
    return jnp.einsum('oi,nil->nol', w[:, :, 0], x, precision=_HI) + b[None, :, None]


def compute_att_maps(p, C, H, W):
    m = bilinear_resize_ac(p['params_xy'], H, W)              # (1,C,H,W)
    m = dwconv2d(m, p['cxy_dw_w'], p['cxy_dw_b'])
    m = jax.nn.gelu(m, approximate=False)
    a_xy = conv1x1_nchw(m, p['cxy_pw_w'], p['cxy_pw_b'])[0]   # (C,H,W)

    m = bilinear_resize_ac(p['params_zx'], C, H)[0]           # (1,C,H)
    m = dwconv1d(m, p['czx_dw_w'], p['czx_dw_b'])
    m = jax.nn.gelu(m, approximate=False)
    a_zx = conv1x1_ncl(m, p['czx_pw_w'], p['czx_pw_b'])[0]    # (C,H)

    m = bilinear_resize_ac(p['params_zy'], C, W)[0]           # (1,C,W)
    m = dwconv1d(m, p['czy_dw_w'], p['czy_dw_b'])
    m = jax.nn.gelu(m, approximate=False)
    a_zy = conv1x1_ncl(m, p['czy_pw_w'], p['czy_pw_b'])[0]    # (C,W)
    return a_xy, a_zx, a_zy


# ------------------------------------------------------------------------------------
# Pure-JAX reference (mirrors the PyTorch forward) for a correctness check
# ------------------------------------------------------------------------------------
def reference_forward(x, p, a_xy, a_zx, a_zy):
    def ln_cf(t, w, b):
        u = jnp.mean(t, axis=1, keepdims=True)
        s = jnp.mean((t - u) ** 2, axis=1, keepdims=True)
        return w[None, :, None, None] * ((t - u) / jnp.sqrt(s + _EPS)) \
            + b[None, :, None, None]

    x = ln_cf(x, p['n1_w'], p['n1_b'])
    res = x
    x1, x2, x3, x4 = jnp.split(x, 4, axis=1)
    x1 = x1 * a_xy[None]
    x2 = x2 * a_zx[None, :, :, None]
    x3 = x3 * a_zy[None, :, None, :]
    y = conv1x1_nchw(x4, p['dw_pw_w'], p['dw_pw_b'])
    y = jax.nn.gelu(y, approximate=False)
    x4 = dwconv2d(y, p['dw_dw_w'], p['dw_dw_b'])
    xc = jnp.concatenate([x1, x2, x3, x4], axis=1)
    xc = ln_cf(xc, p['n2_w'], p['n2_b'])
    xc = xc + res
    z = dwconv2d(xc, p['ldw_dw_w'], p['ldw_dw_b'])
    z = jax.nn.gelu(z, approximate=False)
    z = conv1x1_nchw(z, p['ldw_pw_w'], p['ldw_pw_b'])
    return z


# ------------------------------------------------------------------------------------
if __name__ == "__main__":
    B, dim_in, dim_out, H, W = 2, 16, 16, 16, 16
    gx, gy = 8, 8
    C = dim_in // 4

    key = jax.random.PRNGKey(0)
    ks = jax.random.split(key, 24)

    def rnd(i, shape, s=0.2):
        return s * jax.random.normal(ks[i], shape, jnp.float32)

    p = {
        'params_xy': jnp.ones((1, C, gx, gy), jnp.float32),
        'params_zx': jnp.ones((1, 1, C, gx), jnp.float32),
        'params_zy': jnp.ones((1, 1, C, gy), jnp.float32),
        'cxy_dw_w': rnd(0, (C, 1, 3, 3)), 'cxy_dw_b': rnd(1, (C,), 0.05),
        'cxy_pw_w': rnd(2, (C, C, 1, 1)), 'cxy_pw_b': rnd(3, (C,), 0.05),
        'czx_dw_w': rnd(4, (C, 1, 3)),    'czx_dw_b': rnd(5, (C,), 0.05),
        'czx_pw_w': rnd(6, (C, C, 1)),    'czx_pw_b': rnd(7, (C,), 0.05),
        'czy_dw_w': rnd(8, (C, 1, 3)),    'czy_dw_b': rnd(9, (C,), 0.05),
        'czy_pw_w': rnd(10, (C, C, 1)),   'czy_pw_b': rnd(11, (C,), 0.05),
        'dw_pw_w': rnd(12, (C, C, 1, 1)), 'dw_pw_b': rnd(13, (C,), 0.05),
        'dw_dw_w': rnd(14, (C, 1, 3, 3)), 'dw_dw_b': rnd(15, (C,), 0.05),
        'n1_w': jnp.ones((dim_in,), jnp.float32), 'n1_b': jnp.zeros((dim_in,), jnp.float32),
        'n2_w': jnp.ones((dim_in,), jnp.float32), 'n2_b': jnp.zeros((dim_in,), jnp.float32),
        'ldw_dw_w': rnd(16, (dim_in, 1, 3, 3)), 'ldw_dw_b': rnd(17, (dim_in,), 0.05),
        'ldw_pw_w': rnd(18, (dim_out, dim_in, 1, 1)), 'ldw_pw_b': rnd(19, (dim_out,), 0.05),
    }

    x = jax.random.normal(ks[20], (B, dim_in, H, W), jnp.float32)

    # parameter-only preprocessing (data-independent glue)
    a_xy, a_zx, a_zy = compute_att_maps(p, C, H, W)

    out = ghpa_pallas(x, p, a_xy, a_zx, a_zy)
    out = jax.block_until_ready(out)

    ref = jax.block_until_ready(reference_forward(x, p, a_xy, a_zx, a_zy))
    assert out.shape == (B, dim_out, H, W)
    err = float(jnp.max(jnp.abs(out - ref)))
    if not (err < 2e-3):
        raise AssertionError(f"kernel mismatch vs reference: max abs err {err}")

    print("KERNEL_OK")
</pallas_src>

<mosaic_0001>
module attributes {stable_mosaic.version = 11 : i64} {
  func.func @k(%arg0: memref<8x256xf32, #tpu.memory_space<vmem>>, %arg1: memref<8x256xf32, #tpu.memory_space<vmem>>) attributes {dimension_semantics = [], scalar_prefetch = 0 : i64, scratch_operands = 0 : i64, tpu.core_type = #tpu.core_type<tc>} {
    %c0 = arith.constant 0 : index
    %c0_0 = arith.constant 0 : index
    %0 = vector.load %arg0[%c0, %c0_0] : memref<8x256xf32, #tpu.memory_space<vmem>>, vector<8x256xf32>
    %c3_i32 = arith.constant 3 : i32
    %1 = tpu.dynamic_rotate %0 by %c3_i32 dim 1 : vector<8x256xf32>, i32 -> vector<8x256xf32>
    %c0_1 = arith.constant 0 : index
    %c0_2 = arith.constant 0 : index
    %2 = vector.load %arg1[%c0_1, %c0_2] : memref<8x256xf32, #tpu.memory_space<vmem>>, vector<8x256xf32>
    tpu.vector_store %arg1[%c0_1, %c0_2], %1 {strides = array<i32>} : memref<8x256xf32, #tpu.memory_space<vmem>>, vector<8x256xf32>,
    return
  }
}

</mosaic_0001>

<llo_original>
// kernel: tpu_custom_call.1
$region0: #{tpu_custom_call.1}
  #allocation0 [shape = 'u32[]', space=smem, size = 0x4, offset = 0x4, fixed_abs, tag = 'smem constant byte address 0x4 - core index']
  #allocation1 [shape = 'u32[144,128]{1,0:T(1,128)}', space=vmem, size = 0x12000, scoped, tag = 'internal scratch']
  %s0 = inlined_call_operand.hbm [shape: f32[8,256], index: 0, kind: input, shape index: {}]
  %s1 = inlined_call_operand.hbm [shape: f32[8,256], index: 1, kind: output, shape index: {}]
  %s2 = sld [smem:[#allocation0]]
  $region18: #{tpu_custom_call.1} parent=0
    _
  %s4 = ssub.s32 1, %s2
  %s5 = scalar_select 0, %s4, %s2
  $region1: #{tpu_custom_call.1} parent=0
    #allocation2 [shape = 'u8[8192]{0}', space=vmem, size = 0x2000, scoped, tag = 'input window, operand 0, single buffered']
    #allocation3 [shape = 's32[1]{0}', space=sflag, size = 0x4, scoped, tag = 'scoped memory for tpu_custom_call.1']
    #allocation4 [shape = 's32[1]{0}', space=sflag, size = 0x4, scoped, tag = 'scoped memory for tpu_custom_call.1']
    #allocation5 [shape = 'u8[8192]{0}', space=vmem, size = 0x2000, scoped, tag = 'output window, operand 0, single buffered']
    %6 = vsyncpa [#allocation3], 0
    %7 = vsyncpa [#allocation4], 0
    // Predicated region
    $region2: #{tpu_custom_call.1} parent=1 // pred_check
      _
    $region3: #{tpu_custom_call.1} parent=1 // pred_check_branch
      %9 = sbr.rel (0) target = $region5
    $region4: #{tpu_custom_call.1} parent=1 // pred_region
      %s11 = ssub.s32 256, 256
      %12 = vsyncadd [#allocation3], %s11
      %s14 = sshll.u32 [#allocation2], 4
      %s15 = int_to_ptr.vmem [resolvable:$true] %s14
      %17 = dma.hbm_to_vmem [thread:$0]  %s0, 256, %s15, [#allocation3]
    $region5: #{tpu_custom_call.1} parent=1 // pred_fallthru
      _
    // Predicated region
    $region6: #{tpu_custom_call.1} parent=1 // pred_check
      _
    $region7: #{tpu_custom_call.1} parent=1 // pred_check_branch
      %19 = sbr.rel (0) target = $region9
    $region8: #{tpu_custom_call.1} parent=1 // pred_region
      %20 = dma.done [#allocation3], 256
    $region9: #{tpu_custom_call.1} parent=1 // pred_fallthru
      _
    %v21 = vld [vmem:[#allocation2] sm:$0xff]
    %v22 = vld [vmem:[#allocation2 + $0x8] sm:$0xff]
    %23 = vrot.lane.b32.xlu0 %v21, 3
    %v24 = vpop.permute.xlu0 %23
    %25 = vrot.lane.b32.xlu0 %v22, 3
    %v26 = vpop.permute.xlu0 %25
    %v27 = vlaneseq
    %v28 = vand.u32 %v27, 127
    %vm29 = vcmp.lt.s32.totalorder %v28, 3
    %v30 = vsel %vm29, %v24, %v26
    %v31 = vsel %vm29, %v26, %v24
    %32 = vst [vmem:[#allocation5] sm:$0xff] %v31
    %33 = vst [vmem:[#allocation5 + $0x8] sm:$0xff] %v30
    // Predicated region
    $region10: #{tpu_custom_call.1} parent=1 // pred_check
      _
    $region11: #{tpu_custom_call.1} parent=1 // pred_check_branch
      %35 = sbr.rel (0) target = $region13
    $region12: #{tpu_custom_call.1} parent=1 // pred_region
      %s37 = ssub.s32 256, 256
      %38 = vsyncadd [#allocation4], %s37
      %s40 = sshll.u32 [#allocation5], 4
      %s41 = int_to_ptr.vmem [resolvable:$true] %s40
      %43 = dma.vmem_to_hbm [thread:$0]  %s41, 256, %s1, [#allocation4]
    $region13: #{tpu_custom_call.1} parent=1 // pred_fallthru
      _
    // Predicated region
    $region14: #{tpu_custom_call.1} parent=1 // pred_check
      _
    $region15: #{tpu_custom_call.1} parent=1 // pred_check_branch
      %45 = sbr.rel (0) target = $region17
    $region16: #{tpu_custom_call.1} parent=1 // pred_region
      %46 = dma.done [#allocation4], 256
    $region17: #{tpu_custom_call.1} parent=1 // pred_fallthru
      _
    %47 = vsyncpa [#allocation3], 1
    %48 = vsyncpa [#allocation4], 1

</llo_original>
